<compile_context>
chip_gen: v7x
topology: tpu7x:2x2x1
jax: 0.10.0
libtpu: 0.0.40
codegen_flags: <defaults>
</compile_context>

<pallas_src>
import jax
import jax.numpy as jnp
from jax.experimental import pallas as pl
from jax.experimental.pallas import tpu as pltpu

_LANE = 128      # vreg lane width
_SUBLANE = 8     # vreg sublane count


def _round_up(x, m):
    return ((x + m - 1) // m) * m


def _make_fused_kernel(layout, n_linear):
    """Kernel computing the full 2-critic MLP in one invocation.

    Refs: state (B, d_state), action (B, d_action), param slab (rows, 128),
    out (B, 128).  `layout[name] = (row_start, n_rows, n_cols)` gives the static
    slice of each fused parameter inside the slab.
    """

    def kernel(s_ref, a_ref, p_ref, out_ref):
        def blk(name):
            r0, nr, nc = layout[name]
            return p_ref[r0:r0 + nr, :nc]

        # Layer 0: split matmul replaces cat([state, action], 1) @ W0.
        h = (
            jnp.dot(s_ref[...], blk("w0_s"), preferred_element_type=jnp.float32)
            + jnp.dot(a_ref[...], blk("w0_a"), preferred_element_type=jnp.float32)
            + blk("b0")
        )
        if n_linear > 1:
            h = jnp.maximum(h, 0.0)  # ReLU on hidden layers only

        for l in range(1, n_linear):
            h = jnp.dot(h, blk(f"w{l}"), preferred_element_type=jnp.float32) + blk(f"b{l}")
            if l < n_linear - 1:
                h = jnp.maximum(h, 0.0)

        # h is (B, 128): full-tile, unmasked store.  Real Q values live in the
        # first `ensemble_size` columns; the padding columns are exactly zero.
        out_ref[...] = h.astype(out_ref.dtype)

    return kernel


def fuse_params(weights, biases, d_state):
    """One-time packing of the per-critic parameters into a single VMEM slab.

    weights[l]: (E, in_l, out_l), biases[l]: (E, 1, out_l).

    Layer 0 is concatenated along the output axis (and split into state/action
    row groups); later layers are block-diagonal over the ensemble.  Every block
    is zero-padded to a multiple-of-8 row count and 128-lane width, then stacked
    vertically into one (rows, slab_width) f32 slab.

    Returns (slab, layout, meta) where `layout` / `meta` are static Python data.
    Call this ONCE and cache the result -- do not rebuild per training step.
    """
    E = int(weights[0].shape[0])
    n_linear = len(weights)
    f32 = jnp.float32

    out_dims = [E * int(w.shape[2]) for w in weights]              # e.g. [64, 64, 2]
    pad_out = [_round_up(max(d, 1), _LANE) for d in out_dims]      # e.g. [128, 128, 128]
    slab_width = max(pad_out)

    # Fused (unpadded) matrices.
    w0 = jnp.concatenate([weights[0][e] for e in range(E)], axis=1)            # (D, E*H)
    b_fused = [jnp.concatenate([biases[l][e] for e in range(E)], axis=1)
               for l in range(n_linear)]
    w_fused = [w0] + [
        jax.scipy.linalg.block_diag(*[weights[l][e] for e in range(E)])
        for l in range(1, n_linear)
    ]

    blocks = []  # (name, n_rows_slice, n_cols_slice, padded_block)

    def add_block(name, mat, n_rows_slice, n_cols_slice):
        rows_store = _round_up(max(n_rows_slice, 1), _SUBLANE)
        padded = jnp.zeros((rows_store, slab_width), f32)
        padded = padded.at[: mat.shape[0], : mat.shape[1]].set(mat.astype(f32))
        blocks.append((name, n_rows_slice, n_cols_slice, padded))

    d_action = int(w_fused[0].shape[0]) - d_state
    add_block("w0_s", w_fused[0][:d_state], d_state, pad_out[0])
    add_block("w0_a", w_fused[0][d_state:], d_action, pad_out[0])
    add_block("b0", b_fused[0], 1, pad_out[0])
    for l in range(1, n_linear):
        # Stored with pad_out[l-1] input rows so it consumes the zero-padded
        # activation columns of the previous layer (padding rows are zero).
        add_block(f"w{l}", w_fused[l], pad_out[l - 1], pad_out[l])
        add_block(f"b{l}", b_fused[l], 1, pad_out[l])

    layout = {}
    row = 0
    slabs = []
    for name, nr, nc, padded in blocks:
        layout[name] = (row, nr, nc)
        slabs.append(padded)
        row += padded.shape[0]
    slab = jnp.concatenate(slabs, axis=0)   # (rows, slab_width) single DMA payload

    meta = dict(
        n_linear=n_linear,
        ensemble_size=E,
        out_width=pad_out[-1],
        d_state=d_state,
        d_action=d_action,
        pad_out=tuple(pad_out),
    )
    return slab, layout, meta


def action_value_forward(state, action, slab, layout, meta):
    """state: (B, d_state), action: (B, d_action).  Returns (E, B, 1)."""
    B = state.shape[0]
    n_linear = meta["n_linear"]
    E = meta["ensemble_size"]
    out_width = meta["out_width"]
    pad_out = meta["pad_out"]

    # Advisory cost hint: three (or n_linear+1) tiny matmuls + one slab read.
    flops = 2 * B * (meta["d_state"] + meta["d_action"]) * pad_out[0]
    for l in range(1, n_linear):
        flops += 2 * B * pad_out[l - 1] * pad_out[l]
    bytes_accessed = 4 * (state.size + action.size + slab.size + B * out_width)

    vmem_spec = pl.BlockSpec(memory_space=pltpu.MemorySpace.VMEM)

    out = pl.pallas_call(
        _make_fused_kernel(layout, n_linear),
        out_shape=jax.ShapeDtypeStruct((B, out_width), state.dtype),
        in_specs=[vmem_spec, vmem_spec, vmem_spec],
        out_specs=vmem_spec,
        cost_estimate=pl.CostEstimate(
            flops=flops, transcendentals=0, bytes_accessed=bytes_accessed
        ),
    )(state, action, slab)

    # (B, out_width) -> take the E real Q columns -> (E, B, 1) like the module.
    q = out[:, :E]
    return jnp.transpose(q)[:, :, None]


def init_params(key, d_state, d_action, n_layers, n_units, ensemble_size=2):
    """Deterministic ParallelLinear init: U(-1/sqrt(fan_in), 1/sqrt(fan_in))."""
    if n_layers == 0:
        dims = [(d_state + d_action, 1)]
    else:
        dims = [(d_state + d_action, n_units)]
        for _ in range(1, n_layers):
            dims.append((n_units, n_units))
        dims.append((n_units, 1))

    weights, biases = [], []
    for fan_in, fan_out in dims:
        key, kw, kb = jax.random.split(key, 3)
        bound = 1.0 / jnp.sqrt(fan_in)
        weights.append(
            jax.random.uniform(kw, (ensemble_size, fan_in, fan_out), jnp.float32, -bound, bound)
        )
        biases.append(
            jax.random.uniform(kb, (ensemble_size, 1, fan_out), jnp.float32, -bound, bound)
        )
    return weights, biases


def reference_forward(state, action, weights, biases):
    """Pure-JAX reference mirroring the PyTorch forward."""
    x = jnp.concatenate([state, action], axis=1)
    x = jnp.broadcast_to(x[None], (weights[0].shape[0],) + x.shape)
    n = len(weights)
    for i, (w, b) in enumerate(zip(weights, biases)):
        x = jnp.einsum("ebi,eio->ebo", x, w) + b
        if i < n - 1:
            x = jnp.maximum(x, 0.0)
    return x


if __name__ == "__main__":
    # Shapes consistent with the module: batch=8, d_state=24, d_action=8,
    # n_layers=2, n_units=32, activation='relu', ensemble_size=2.
    B, D_STATE, D_ACTION, N_LAYERS, N_UNITS = 8, 24, 8, 2, 32

    key = jax.random.PRNGKey(0)
    k_s, k_a, k_p = jax.random.split(key, 3)
    state = jax.random.normal(k_s, (B, D_STATE), jnp.float32)
    action = jax.random.normal(k_a, (B, D_ACTION), jnp.float32)
    weights, biases = init_params(k_p, D_STATE, D_ACTION, N_LAYERS, N_UNITS)

    # One-time fusion/packing of the two critics into a single param slab
    # (cached arrays + static layout; NOT rebuilt per forward step).
    slab, layout, meta = fuse_params(weights, biases, D_STATE)

    out = action_value_forward(state, action, slab, layout, meta)
    out = jax.block_until_ready(out)

    ref = reference_forward(state, action, weights, biases)
    assert out.shape == (2, B, 1), out.shape
    assert jnp.allclose(out, ref, atol=1e-5, rtol=1e-5), "mismatch vs reference"

    print("KERNEL_OK")
</pallas_src>

<mosaic_0001>
module attributes {stable_mosaic.version = 11 : i64} {
  func.func @kernel(%arg0: memref<8x24xf32, #tpu.memory_space<vmem>>, %arg1: memref<8x8xf32, #tpu.memory_space<vmem>>, %arg2: memref<312x128xf32, #tpu.memory_space<vmem>>, %arg3: memref<8x128xf32, #tpu.memory_space<vmem>>) attributes {dimension_semantics = [], scalar_prefetch = 0 : i64, scratch_operands = 0 : i64, tpu.core_type = #tpu.core_type<tc>} {
    %c0 = arith.constant 0 : index
    %c0_0 = arith.constant 0 : index
    %0 = vector.load %arg0[%c0, %c0_0] : memref<8x24xf32, #tpu.memory_space<vmem>>, vector<8x24xf32>
    %c0_1 = arith.constant 0 : index
    %c0_2 = arith.constant 0 : index
    %1 = vector.load %arg2[%c0_1, %c0_2] : memref<312x128xf32, #tpu.memory_space<vmem>>, vector<24x128xf32>
    %cst = arith.constant dense<0.000000e+00> : vector<8x128xf32>
    %2 = tpu.matmul %0, %1, %cst {dimension_numbers = #tpu.dot_dimension_numbers<[1], [0], [0], [1], [0, 0, 1, 1], [], []>} : vector<8x24xf32>, vector<24x128xf32>, vector<8x128xf32> -> vector<8x128xf32>
    %c0_3 = arith.constant 0 : index
    %c0_4 = arith.constant 0 : index
    %3 = vector.load %arg1[%c0_3, %c0_4] : memref<8x8xf32, #tpu.memory_space<vmem>>, vector<8x8xf32>
    %c24 = arith.constant 24 : index
    %c0_5 = arith.constant 0 : index
    %4 = vector.load %arg2[%c24, %c0_5] : memref<312x128xf32, #tpu.memory_space<vmem>>, vector<8x128xf32>
    %cst_6 = arith.constant dense<0.000000e+00> : vector<8x128xf32>
    %5 = tpu.matmul %3, %4, %cst_6 {dimension_numbers = #tpu.dot_dimension_numbers<[1], [0], [0], [1], [0, 0, 1, 1], [], []>} : vector<8x8xf32>, vector<8x128xf32>, vector<8x128xf32> -> vector<8x128xf32>
    %6 = arith.addf %2, %5 : vector<8x128xf32>
    %c32 = arith.constant 32 : index
    %c0_7 = arith.constant 0 : index
    %7 = vector.load %arg2[%c32, %c0_7] : memref<312x128xf32, #tpu.memory_space<vmem>>, vector<1x128xf32>
    %8 = vector.broadcast %7 : vector<1x128xf32> to vector<8x128xf32>
    %9 = arith.addf %6, %8 : vector<8x128xf32>
    %cst_8 = arith.constant 0.000000e+00 : f32
    %10 = vector.broadcast %cst_8 : f32 to vector<8x128xf32>
    %11 = arith.maximumf %9, %10 : vector<8x128xf32>
    %c40 = arith.constant 40 : index
    %c0_9 = arith.constant 0 : index
    %12 = vector.load %arg2[%c40, %c0_9] : memref<312x128xf32, #tpu.memory_space<vmem>>, vector<128x128xf32>
    %cst_10 = arith.constant dense<0.000000e+00> : vector<8x128xf32>
    %13 = tpu.matmul %11, %12, %cst_10 {dimension_numbers = #tpu.dot_dimension_numbers<[1], [0], [0], [1], [0, 0, 1, 1], [], []>} : vector<8x128xf32>, vector<128x128xf32>, vector<8x128xf32> -> vector<8x128xf32>
    %c168 = arith.constant 168 : index
    %c0_11 = arith.constant 0 : index
    %14 = vector.load %arg2[%c168, %c0_11] : memref<312x128xf32, #tpu.memory_space<vmem>>, vector<1x128xf32>
    %15 = vector.broadcast %14 : vector<1x128xf32> to vector<8x128xf32>
    %16 = arith.addf %13, %15 : vector<8x128xf32>
    %cst_12 = arith.constant 0.000000e+00 : f32
    %17 = vector.broadcast %cst_12 : f32 to vector<8x128xf32>
    %18 = arith.maximumf %16, %17 : vector<8x128xf32>
    %c176 = arith.constant 176 : index
    %c0_13 = arith.constant 0 : index
    %19 = vector.load %arg2[%c176, %c0_13] : memref<312x128xf32, #tpu.memory_space<vmem>>, vector<128x128xf32>
    %cst_14 = arith.constant dense<0.000000e+00> : vector<8x128xf32>
    %20 = tpu.matmul %18, %19, %cst_14 {dimension_numbers = #tpu.dot_dimension_numbers<[1], [0], [0], [1], [0, 0, 1, 1], [], []>} : vector<8x128xf32>, vector<128x128xf32>, vector<8x128xf32> -> vector<8x128xf32>
    %c304 = arith.constant 304 : index
    %c0_15 = arith.constant 0 : index
    %21 = vector.load %arg2[%c304, %c0_15] : memref<312x128xf32, #tpu.memory_space<vmem>>, vector<1x128xf32>
    %22 = vector.broadcast %21 : vector<1x128xf32> to vector<8x128xf32>
    %23 = arith.addf %20, %22 : vector<8x128xf32>
    %c0_16 = arith.constant 0 : index
    %c0_17 = arith.constant 0 : index
    %24 = vector.load %arg3[%c0_16, %c0_17] : memref<8x128xf32, #tpu.memory_space<vmem>>, vector<8x128xf32>
    tpu.vector_store %arg3[%c0_16, %c0_17], %23 {strides = array<i32>} : memref<8x128xf32, #tpu.memory_space<vmem>>, vector<8x128xf32>,
    return
  }
}

</mosaic_0001>

<llo_original>
// kernel: tpu_custom_call.1
$region0: #{tpu_custom_call.1}
  #allocation0 [shape = 'u32[]', space=smem, size = 0x4, offset = 0x4, fixed_abs, tag = 'smem constant byte address 0x4 - core index']
  #allocation1 [shape = 'u32[144,128]{1,0:T(1,128)}', space=vmem, size = 0x12000, scoped, tag = 'internal scratch']
  %s0 = inlined_call_operand.hbm [shape: f32[8,24], index: 0, kind: input, shape index: {}]
  %s1 = inlined_call_operand.hbm [shape: f32[8,8], index: 1, kind: input, shape index: {}]
  %s2 = inlined_call_operand.hbm [shape: f32[312,128], index: 2, kind: input, shape index: {}]
  %s3 = inlined_call_operand.hbm [shape: f32[8,128], index: 3, kind: output, shape index: {}]
  %s4 = sld [smem:[#allocation0]]
  $region34: #{tpu_custom_call.1} parent=0
    _
  %s6 = ssub.s32 1, %s4
  %s7 = scalar_select 0, %s6, %s4
  $region1: #{tpu_custom_call.1} parent=0
    #allocation2 [shape = 'u8[4096]{0}', space=vmem, size = 0x1000, scoped, tag = 'input window, operand 0, single buffered']
    #allocation3 [shape = 's32[1]{0}', space=sflag, size = 0x4, scoped, tag = 'scoped memory for tpu_custom_call.1']
    #allocation4 [shape = 's32[1]{0}', space=sflag, size = 0x4, scoped, tag = 'scoped memory for tpu_custom_call.1']
    #allocation5 [shape = 'u8[4096]{0}', space=vmem, size = 0x1000, scoped, tag = 'input window, operand 1, single buffered']
    #allocation6 [shape = 's32[1]{0}', space=sflag, size = 0x4, scoped, tag = 'scoped memory for tpu_custom_call.1']
    #allocation7 [shape = 'u8[159744]{0}', space=vmem, size = 0x27000, scoped, tag = 'input window, operand 2, single buffered']
    #allocation8 [shape = 'u8[4096]{0}', space=vmem, size = 0x1000, scoped, tag = 'output window, operand 0, single buffered']
    %8 = vsyncpa [#allocation3], 0
    %9 = vsyncpa [#allocation6], 0
    %10 = vsyncpa [#allocation4], 0
    // Predicated region
    $region2: #{tpu_custom_call.1} parent=1 // pred_check
      _
    $region3: #{tpu_custom_call.1} parent=1 // pred_check_branch
      %12 = sbr.rel (0) target = $region5
    $region4: #{tpu_custom_call.1} parent=1 // pred_region
      %s14 = ssub.s32 128, 128
      %15 = vsyncadd [#allocation3], %s14
      %s17 = sshll.u32 [#allocation2], 4
      %s18 = int_to_ptr.vmem [resolvable:$true] %s17
      %20 = dma.hbm_to_vmem [thread:$0]  %s0, 128, %s18, [#allocation3]
    $region5: #{tpu_custom_call.1} parent=1 // pred_fallthru
      _
    // Predicated region
    $region6: #{tpu_custom_call.1} parent=1 // pred_check
      _
    $region7: #{tpu_custom_call.1} parent=1 // pred_check_branch
      %22 = sbr.rel (0) target = $region9
    $region8: #{tpu_custom_call.1} parent=1 // pred_region
      %s24 = ssub.s32 128, 128
      %25 = vsyncadd [#allocation6], %s24
      %s27 = sshll.u32 [#allocation5], 4
      %s28 = int_to_ptr.vmem [resolvable:$true] %s27
      %30 = dma.hbm_to_vmem [thread:$0]  %s1, 128, %s28, [#allocation6]
    $region9: #{tpu_custom_call.1} parent=1 // pred_fallthru
      _
    // Predicated region
    $region10: #{tpu_custom_call.1} parent=1 // pred_check
      _
    $region11: #{tpu_custom_call.1} parent=1 // pred_check_branch
      %32 = sbr.rel (0) target = $region13
    $region12: #{tpu_custom_call.1} parent=1 // pred_region
      %s34 = ssub.s32 4992, 4992
      %35 = vsyncadd [#allocation6], %s34
      %s36 = sshll.u32 [#allocation7], 4
      %s37 = int_to_ptr.vmem [resolvable:$true] %s36
      %42 = dma.hbm_to_vmem [thread:$0]  %s2, 4992, %s37, [#allocation6], 128, 128, 8
    $region13: #{tpu_custom_call.1} parent=1 // pred_fallthru
      _
    // Predicated region
    $region14: #{tpu_custom_call.1} parent=1 // pred_check
      _
    $region15: #{tpu_custom_call.1} parent=1 // pred_check_branch
      %44 = sbr.rel (0) target = $region17
    $region16: #{tpu_custom_call.1} parent=1 // pred_region
      %45 = dma.done [#allocation3], 128
    $region17: #{tpu_custom_call.1} parent=1 // pred_fallthru
      _
    // Predicated region
    $region18: #{tpu_custom_call.1} parent=1 // pred_check
      _
    $region19: #{tpu_custom_call.1} parent=1 // pred_check_branch
      %47 = sbr.rel (0) target = $region21
    $region20: #{tpu_custom_call.1} parent=1 // pred_region
      %48 = dma.done [#allocation6], 128
    $region21: #{tpu_custom_call.1} parent=1 // pred_fallthru
      _
    // Predicated region
    $region22: #{tpu_custom_call.1} parent=1 // pred_check
      _
    $region23: #{tpu_custom_call.1} parent=1 // pred_check_branch
      %50 = sbr.rel (0) target = $region25
    $region24: #{tpu_custom_call.1} parent=1 // pred_region
      %51 = dma.done [#allocation6], 4992
    $region25: #{tpu_custom_call.1} parent=1 // pred_fallthru
      _
    %v52 = vld [vmem:[#allocation2] sm:$0xff]
    %v53 = vld [vmem:[#allocation7] sm:$0xff]
    %v54 = vld [vmem:[#allocation7 + $0x8] sm:$0xff]
    %v55 = vld [vmem:[#allocation7 + $0x10] sm:$0xff]
    %v56 = vld [vmem:[#allocation5] sm:$0xff]
    %v57 = vld [vmem:[#allocation7 + $0x18] sm:$0xff]
    %vm58 = vcmask 64512
    %v60 = vsel %vm58, %v56, 0
    %62 = vmatprep.subr.mxu0 0.0
    %63 = vmatpush1.msra.mxu0 %v57
    %64 = vmatprep.subr.mxu0 0.0
    %65 = vmatpush1.msra.mxu0 0.0
    %66 = vmatprep.subr.mxu0 0.0
    %67 = vmatpush1.msra.mxu0 0.0
    %68 = vmatprep.subr.mxu0 0.0
    %69 = vmatpush1.msra.mxu0 0.0
    %70 = vmatprep.subr.mxu0 0.0
    %71 = vmatpush1.msra.mxu0 0.0
    %72 = vmatprep.subr.mxu0 0.0
    %73 = vmatpush1.msra.mxu0 0.0
    %74 = vmatprep.subr.mxu0 0.0
    %75 = vmatpush1.msra.mxu0 0.0
    %76 = vmatprep.subr.mxu0 0.0
    %77 = vmatpush1.msra.mxu0 0.0
    %78 = vmatprep.subr.mxu0 0.0
    %79 = vmatpush1.msra.mxu0 0.0
    %80 = vmatprep.subr.mxu0 0.0
    %81 = vmatpush1.msra.mxu0 0.0
    %82 = vmatprep.subr.mxu0 0.0
    %83 = vmatpush1.msra.mxu0 0.0
    %84 = vmatprep.subr.mxu0 0.0
    %85 = vmatpush1.msra.mxu0 0.0
    %86 = vmatprep.subr.mxu0 0.0
    %87 = vmatpush1.msra.mxu0 0.0
    %88 = vmatprep.subr.mxu0 0.0
    %89 = vmatpush1.msra.mxu0 0.0
    %90 = vmatprep.subr.mxu0 0.0
    %91 = vmatpush1.msra.mxu0 0.0
    %92 = vmatprep.subr.mxu0 0.0
    %93 = vmatpush1.msra.mxu0 0.0
    %94 = vmatprep.subr.mxu0 0.0
    %95 = vmatpush1.msra.mxu0 0.0
    %96 = vmatprep.subr.mxu0 0.0
    %97 = vmatpush1.msra.mxu0 0.0
    %98 = vmatprep.subr.mxu0 0.0
    %99 = vmatpush1.msra.mxu0 0.0
    %100 = vmatprep.subr.mxu0 0.0
    %101 = vmatpush1.msra.mxu0 0.0
    %102 = vmatprep.subr.mxu0 0.0
    %103 = vmatpush1.msra.mxu0 0.0
    %104 = vmatprep.subr.mxu0 0.0
    %105 = vmatpush1.msra.mxu0 0.0
    %106 = vmatprep.subr.mxu0 0.0
    %107 = vmatpush1.msra.mxu0 0.0
    %108 = vmatprep.subr.mxu0 0.0
    %109 = vmatpush1.msra.mxu0 0.0
    %110 = vmatprep.subr.mxu0 0.0
    %111 = vmatpush1.msra.mxu0 0.0
    %112 = vmatprep.subr.mxu0 0.0
    %113 = vmatpush1.msra.mxu0 0.0
    %114 = vmatprep.subr.mxu0 0.0
    %115 = vmatpush1.msra.mxu0 0.0
    %116 = vmatprep.subr.mxu0 0.0
    %117 = vmatpush1.msra.mxu0 0.0
    %118 = vmatprep.subr.mxu0 0.0
    %119 = vmatpush1.msra.mxu0 0.0
    %120 = vmatprep.subr.mxu0 0.0
    %121 = vmatpush1.msra.mxu0 0.0
    %122 = vmatprep.subr.mxu0 0.0
    %123 = vmatpush1.msra.mxu0 0.0
    %124 = vmatprep.subr.mxu0 0.0
    %125 = vmatpush1.msra.mxu0 0.0
    %126 = vmatprep.mubr.f32.mxu0 0.0
    %127 = vmatmul.mubr.f32.gmra.mrb[0].mxu0 %v60
    %v128 = vpop.f32.mrb[0].mxu0
    %v129 = vadd.f32 0.0, %v128
    %v130 = vpop.f32.mrb[0].mxu0
    %131 = vdwg.mxu0
    %vm132 = vcmask 195584
    %v134 = vsel %vm132, %v52, 0
    %136 = vmatprep.subr.mxu0 0.0
    %137 = vmatpush1.msra.mxu0 %v53
    %138 = vmatprep.subr.mxu0 0.0
    %139 = vmatpush1.msra.mxu0 %v54
    %140 = vmatprep.subr.mxu0 0.0
    %141 = vmatpush1.msra.mxu0 %v55
    %142 = vmatprep.subr.mxu0 0.0
    %143 = vmatpush1.msra.mxu0 0.0
    %144 = vmatprep.subr.mxu0 0.0
    %145 = vmatpush1.msra.mxu0 0.0
    %146 = vmatprep.subr.mxu0 0.0
    %147 = vmatpush1.msra.mxu0 0.0
    %148 = vmatprep.subr.mxu0 0.0
    %149 = vmatpush1.msra.mxu0 0.0
    %150 = vmatprep.subr.mxu0 0.0
    %151 = vmatpush1.msra.mxu0 0.0
    %152 = vmatprep.subr.mxu0 0.0
    %153 = vmatpush1.msra.mxu0 0.0
    %154 = vmatprep.subr.mxu0 0.0
    %155 = vmatpush1.msra.mxu0 0.0
    %156 = vmatprep.subr.mxu0 0.0
    %157 = vmatpush1.msra.mxu0 0.0
    %158 = vmatprep.subr.mxu0 0.0
    %159 = vmatpush1.msra.mxu0 0.0
    %160 = vmatprep.subr.mxu0 0.0
    %161 = vmatpush1.msra.mxu0 0.0
    %162 = vmatprep.subr.mxu0 0.0
    %163 = vmatpush1.msra.mxu0 0.0
    %164 = vmatprep.subr.mxu0 0.0
    %165 = vmatpush1.msra.mxu0 0.0
    %166 = vmatprep.subr.mxu0 0.0
    %167 = vmatpush1.msra.mxu0 0.0
    %168 = vmatprep.subr.mxu0 0.0
    %169 = vmatpush1.msra.mxu0 0.0
    %170 = vmatprep.subr.mxu0 0.0
    %171 = vmatpush1.msra.mxu0 0.0
    %172 = vmatprep.subr.mxu0 0.0
    %173 = vmatpush1.msra.mxu0 0.0
    %174 = vmatprep.subr.mxu0 0.0
    %175 = vmatpush1.msra.mxu0 0.0
    %176 = vmatprep.subr.mxu0 0.0
    %177 = vmatpush1.msra.mxu0 0.0
    %178 = vmatprep.subr.mxu0 0.0
    %179 = vmatpush1.msra.mxu0 0.0
    %180 = vmatprep.subr.mxu0 0.0
    %181 = vmatpush1.msra.mxu0 0.0
    %182 = vmatprep.subr.mxu0 0.0
    %183 = vmatpush1.msra.mxu0 0.0
    %184 = vmatprep.subr.mxu0 0.0
    %185 = vmatpush1.msra.mxu0 0.0
    %186 = vmatprep.subr.mxu0 0.0
    %187 = vmatpush1.msra.mxu0 0.0
    %188 = vmatprep.subr.mxu0 0.0
    %189 = vmatpush1.msra.mxu0 0.0
    %190 = vmatprep.subr.mxu0 0.0
    %191 = vmatpush1.msra.mxu0 0.0
    %192 = vmatprep.subr.mxu0 0.0
    %193 = vmatpush1.msra.mxu0 0.0
    %194 = vmatprep.subr.mxu0 0.0
    %195 = vmatpush1.msra.mxu0 0.0
    %196 = vmatprep.subr.mxu0 0.0
    %197 = vmatpush1.msra.mxu0 0.0
    %198 = vmatprep.subr.mxu0 0.0
    %199 = vmatpush1.msra.mxu0 0.0
    %200 = vmatprep.mubr.f32.mxu0 0.0
    %201 = vmatmul.mubr.f32.gmra.mrb[0].mxu0 %v134
    %v202 = vpop.f32.mrb[0].mxu0
    %v203 = vadd.f32 %v129, %v202
    %v204 = vpop.f32.mrb[0].mxu0
    %205 = vdwg.mxu0
    %v206 = vld [vmem:[#allocation7 + $0x20] sm:$0x1]
    %v207 = vlaneseq
    %v208 = vshrl.u32 %v207, 7
    %v209 = vsub.s32 0, %v208
    %v210 = vrot.slane %v206, %v209
    %v211 = vadd.f32 %v203, %v210
    %v212 = vmax.f32 %v211, 0.0
    %v213 = vld [vmem:[#allocation7 + $0x28] sm:$0xff]
    %v214 = vld [vmem:[#allocation7 + $0x30] sm:$0xff]
    %v215 = vld [vmem:[#allocation7 + $0x38] sm:$0xff]
    %v216 = vld [vmem:[#allocation7 + $0x40] sm:$0xff]
    %v217 = vld [vmem:[#allocation7 + $0x48] sm:$0xff]
    %v218 = vld [vmem:[#allocation7 + $0x50] sm:$0xff]
    %v219 = vld [vmem:[#allocation7 + $0x58] sm:$0xff]
    %v220 = vld [vmem:[#allocation7 + $0x60] sm:$0xff]
    %v221 = vld [vmem:[#allocation7 + $0x68] sm:$0xff]
    %v222 = vld [vmem:[#allocation7 + $0x70] sm:$0xff]
    %v223 = vld [vmem:[#allocation7 + $0x78] sm:$0xff]
    %v224 = vld [vmem:[#allocation7 + $0x80] sm:$0xff]
    %v225 = vld [vmem:[#allocation7 + $0x88] sm:$0xff]
    %v226 = vld [vmem:[#allocation7 + $0x90] sm:$0xff]
    %v227 = vld [vmem:[#allocation7 + $0x98] sm:$0xff]
    %v228 = vld [vmem:[#allocation7 + $0xa0] sm:$0xff]
    %v229 = vld [vmem:[#allocation7 + $0xa8] sm:$0x1]
    %v230 = vlaneseq
    %v231 = vshrl.u32 %v230, 7
    %v232 = vsub.s32 0, %v231
    %v233 = vrot.slane %v229, %v232
    %234 = vmatprep.subr.mxu0 0.0
    %235 = vmatpush1.msra.mxu0 %v213
    %236 = vmatprep.subr.mxu0 0.0
    %237 = vmatpush1.msra.mxu0 %v214
    %238 = vmatprep.subr.mxu0 0.0
    %239 = vmatpush1.msra.mxu0 %v215
    %240 = vmatprep.subr.mxu0 0.0
    %241 = vmatpush1.msra.mxu0 %v216
    %242 = vmatprep.subr.mxu0 0.0
    %243 = vmatpush1.msra.mxu0 %v217
    %244 = vmatprep.subr.mxu0 0.0
    %245 = vmatpush1.msra.mxu0 %v218
    %246 = vmatprep.subr.mxu0 0.0
    %247 = vmatpush1.msra.mxu0 %v219
    %248 = vmatprep.subr.mxu0 0.0
    %249 = vmatpush1.msra.mxu0 %v220
    %250 = vmatprep.subr.mxu0 0.0
    %251 = vmatpush1.msra.mxu0 %v221
    %252 = vmatprep.subr.mxu0 0.0
    %253 = vmatpush1.msra.mxu0 %v222
    %254 = vmatprep.subr.mxu0 0.0
    %255 = vmatpush1.msra.mxu0 %v223
    %256 = vmatprep.subr.mxu0 0.0
    %257 = vmatpush1.msra.mxu0 %v224
    %258 = vmatprep.subr.mxu0 0.0
    %259 = vmatpush1.msra.mxu0 %v225
    %260 = vmatprep.subr.mxu0 0.0
    %261 = vmatpush1.msra.mxu0 %v226
    %262 = vmatprep.subr.mxu0 0.0
    %263 = vmatpush1.msra.mxu0 %v227
    %264 = vmatprep.subr.mxu0 0.0
    %265 = vmatpush1.msra.mxu0 %v228
    %266 = vmatprep.subr.mxu0 0.0
    %267 = vmatpush1.msra.mxu0 0.0
    %268 = vmatprep.subr.mxu0 0.0
    %269 = vmatpush1.msra.mxu0 0.0
    %270 = vmatprep.subr.mxu0 0.0
    %271 = vmatpush1.msra.mxu0 0.0
    %272 = vmatprep.subr.mxu0 0.0
    %273 = vmatpush1.msra.mxu0 0.0
    %274 = vmatprep.subr.mxu0 0.0
    %275 = vmatpush1.msra.mxu0 0.0
    %276 = vmatprep.subr.mxu0 0.0
    %277 = vmatpush1.msra.mxu0 0.0
    %278 = vmatprep.subr.mxu0 0.0
    %279 = vmatpush1.msra.mxu0 0.0
    %280 = vmatprep.subr.mxu0 0.0
    %281 = vmatpush1.msra.mxu0 0.0
    %282 = vmatprep.subr.mxu0 0.0
    %283 = vmatpush1.msra.mxu0 0.0
    %284 = vmatprep.subr.mxu0 0.0
    %285 = vmatpush1.msra.mxu0 0.0
    %286 = vmatprep.subr.mxu0 0.0
    %287 = vmatpush1.msra.mxu0 0.0
    %288 = vmatprep.subr.mxu0 0.0
    %289 = vmatpush1.msra.mxu0 0.0
    %290 = vmatprep.subr.mxu0 0.0
    %291 = vmatpush1.msra.mxu0 0.0
    %292 = vmatprep.subr.mxu0 0.0
    %293 = vmatpush1.msra.mxu0 0.0
    %294 = vmatprep.subr.mxu0 0.0
    %295 = vmatpush1.msra.mxu0 0.0
    %296 = vmatprep.subr.mxu0 0.0
    %297 = vmatpush1.msra.mxu0 0.0
    %298 = vmatprep.mubr.f32.mxu0 0.0
    %299 = vmatmul.mubr.f32.gmra.mrb[0].mxu0 %v212
    %v300 = vpop.f32.mrb[0].mxu0
    %v301 = vadd.f32 %v233, %v300
    %v302 = vpop.f32.mrb[0].mxu0
    %303 = vdwg.mxu0
    %v304 = vmax.f32 %v301, 0.0
    %v305 = vld [vmem:[#allocation7 + $0xb0] sm:$0xff]
    %v306 = vld [vmem:[#allocation7 + $0xb8] sm:$0xff]
    %v307 = vld [vmem:[#allocation7 + $0xc0] sm:$0xff]
    %v308 = vld [vmem:[#allocation7 + $0xc8] sm:$0xff]
    %v309 = vld [vmem:[#allocation7 + $0xd0] sm:$0xff]
    %v310 = vld [vmem:[#allocation7 + $0xd8] sm:$0xff]
    %v311 = vld [vmem:[#allocation7 + $0xe0] sm:$0xff]
    %v312 = vld [vmem:[#allocation7 + $0xe8] sm:$0xff]
    %v313 = vld [vmem:[#allocation7 + $0xf0] sm:$0xff]
    %v314 = vld [vmem:[#allocation7 + $0xf8] sm:$0xff]
    %v315 = vld [vmem:[#allocation7 + $0x100] sm:$0xff]
    %v316 = vld [vmem:[#allocation7 + $0x108] sm:$0xff]
    %v317 = vld [vmem:[#allocation7 + $0x110] sm:$0xff]
    %v318 = vld [vmem:[#allocation7 + $0x118] sm:$0xff]
    %v319 = vld [vmem:[#allocation7 + $0x120] sm:$0xff]
    %v320 = vld [vmem:[#allocation7 + $0x128] sm:$0xff]
    %v321 = vld [vmem:[#allocation7 + $0x130] sm:$0x1]
    %v322 = vlaneseq
    %v323 = vshrl.u32 %v322, 7
    %v324 = vsub.s32 0, %v323
    %v325 = vrot.slane %v321, %v324
    %326 = vmatprep.subr.mxu0 0.0
    %327 = vmatpush1.msra.mxu0 %v305
    %328 = vmatprep.subr.mxu0 0.0
    %329 = vmatpush1.msra.mxu0 %v306
    %330 = vmatprep.subr.mxu0 0.0
    %331 = vmatpush1.msra.mxu0 %v307
    %332 = vmatprep.subr.mxu0 0.0
    %333 = vmatpush1.msra.mxu0 %v308
    %334 = vmatprep.subr.mxu0 0.0
    %335 = vmatpush1.msra.mxu0 %v309
    %336 = vmatprep.subr.mxu0 0.0
    %337 = vmatpush1.msra.mxu0 %v310
    %338 = vmatprep.subr.mxu0 0.0
    %339 = vmatpush1.msra.mxu0 %v311
    %340 = vmatprep.subr.mxu0 0.0
    %341 = vmatpush1.msra.mxu0 %v312
    %342 = vmatprep.subr.mxu0 0.0
    %343 = vmatpush1.msra.mxu0 %v313
    %344 = vmatprep.subr.mxu0 0.0
    %345 = vmatpush1.msra.mxu0 %v314
    %346 = vmatprep.subr.mxu0 0.0
    %347 = vmatpush1.msra.mxu0 %v315
    %348 = vmatprep.subr.mxu0 0.0
    %349 = vmatpush1.msra.mxu0 %v316
    %350 = vmatprep.subr.mxu0 0.0
    %351 = vmatpush1.msra.mxu0 %v317
    %352 = vmatprep.subr.mxu0 0.0
    %353 = vmatpush1.msra.mxu0 %v318
    %354 = vmatprep.subr.mxu0 0.0
    %355 = vmatpush1.msra.mxu0 %v319
    %356 = vmatprep.subr.mxu0 0.0
    %357 = vmatpush1.msra.mxu0 %v320
    %358 = vmatprep.subr.mxu0 0.0
    %359 = vmatpush1.msra.mxu0 0.0
    %360 = vmatprep.subr.mxu0 0.0
    %361 = vmatpush1.msra.mxu0 0.0
    %362 = vmatprep.subr.mxu0 0.0
    %363 = vmatpush1.msra.mxu0 0.0
    %364 = vmatprep.subr.mxu0 0.0
    %365 = vmatpush1.msra.mxu0 0.0
    %366 = vmatprep.subr.mxu0 0.0
    %367 = vmatpush1.msra.mxu0 0.0
    %368 = vmatprep.subr.mxu0 0.0
    %369 = vmatpush1.msra.mxu0 0.0
    %370 = vmatprep.subr.mxu0 0.0
    %371 = vmatpush1.msra.mxu0 0.0
    %372 = vmatprep.subr.mxu0 0.0
    %373 = vmatpush1.msra.mxu0 0.0
    %374 = vmatprep.subr.mxu0 0.0
    %375 = vmatpush1.msra.mxu0 0.0
    %376 = vmatprep.subr.mxu0 0.0
    %377 = vmatpush1.msra.mxu0 0.0
    %378 = vmatprep.subr.mxu0 0.0
    %379 = vmatpush1.msra.mxu0 0.0
    %380 = vmatprep.subr.mxu0 0.0
    %381 = vmatpush1.msra.mxu0 0.0
    %382 = vmatprep.subr.mxu0 0.0
    %383 = vmatpush1.msra.mxu0 0.0
    %384 = vmatprep.subr.mxu0 0.0
    %385 = vmatpush1.msra.mxu0 0.0
    %386 = vmatprep.subr.mxu0 0.0
    %387 = vmatpush1.msra.mxu0 0.0
    %388 = vmatprep.subr.mxu0 0.0
    %389 = vmatpush1.msra.mxu0 0.0
    %390 = vmatprep.mubr.f32.mxu0 0.0
    %391 = vmatmul.mubr.f32.gmra.mrb[0].mxu0 %v304
    %v392 = vpop.f32.mrb[0].mxu0
    %v393 = vadd.f32 %v325, %v392
    %v394 = vpop.f32.mrb[0].mxu0
    %395 = vdwg.mxu0
    %396 = vst [vmem:[#allocation8] sm:$0xff] %v393
    // Predicated region
    $region26: #{tpu_custom_call.1} parent=1 // pred_check
      _
    $region27: #{tpu_custom_call.1} parent=1 // pred_check_branch
      %398 = sbr.rel (0) target = $region29
    $region28: #{tpu_custom_call.1} parent=1 // pred_region
      %s400 = ssub.s32 128, 128
      %401 = vsyncadd [#allocation4], %s400
      %s403 = sshll.u32 [#allocation8], 4
      %s404 = int_to_ptr.vmem [resolvable:$true] %s403
      %406 = dma.vmem_to_hbm [thread:$0]  %s404, 128, %s3, [#allocation4]
    $region29: #{tpu_custom_call.1} parent=1 // pred_fallthru
      _
    // Predicated region
    $region30: #{tpu_custom_call.1} parent=1 // pred_check
      _
    $region31: #{tpu_custom_call.1} parent=1 // pred_check_branch
      %408 = sbr.rel (0) target = $region33
    $region32: #{tpu_custom_call.1} parent=1 // pred_region
      %409 = dma.done [#allocation4], 128
    $region33: #{tpu_custom_call.1} parent=1 // pred_fallthru
      _
    %410 = vsyncpa [#allocation3], 1
    %411 = vsyncpa [#allocation6], 1
    %412 = vsyncpa [#allocation4], 1

</llo_original>
